<compile_context>
chip_gen: v5e
topology: v5e:2x2
jax: 0.10.0
libtpu: 0.0.40
codegen_flags: <defaults>
</compile_context>

<pallas_src>
import functools

import jax
import jax.numpy as jnp
import numpy as np
from jax.experimental import pallas as pl
from jax.experimental.pallas import tpu as pltpu

_KP = 56  # padded tap rows: row 8*dy + dx (dx < 7); the dx == 7 row of each group is zero


def _cbam_kernel(x_ref, ca_ref, wcat_ref, row_ref, col_ref, bs_ref, o_ref, *, H, W):
    # x_ref   : (Nb, C, H*W) f32   NCHW input, spatial dims flattened (lane-dense)
    # ca_ref  : (Nb, C, 1)   f32   precomputed per-image channel-attention gate
    # wcat_ref: (112, C)     bf16  [w_hi(56 rows); w_lo(56 rows)], row 8*dy+dx
    # row_ref : (1, H*W)     int32 pixel -> row index
    # col_ref : (1, H*W)     int32 pixel -> col index
    # bs_ref  : (1,)         f32   SMEM, spatial-conv bias
    # o_ref   : (Nb, C, H*W) f32   output
    nb = x_ref.shape[0]
    HW = H * W

    row = row_ref[...]                       # (1, HW) int32
    col = col_ref[...]                       # (1, HW) int32
    wc = wcat_ref[...]                       # (112, C) bf16
    w_hi = wcat_ref[0:_KP, :]                # (56, C)  bf16 (aligned slice)
    bias = bs_ref[0]

    # Halo-validity masks (hoisted out of the per-image loop; no in-kernel iota).
    rmasks = [(row >= 3 - dy) & (row <= H + 2 - dy) for dy in range(7)]
    cmasks = [(col >= 3 - dx) & (col <= W + 2 - dx) for dx in range(7)]

    for b in range(nb):
        x = x_ref[b]                                                   # (C, HW) f32

        # ---- spatial attention: 7x7 conv (C -> 1), padding 3 ----
        # Channel reduction on the MXU with a bf16x3 split fused into 2 matmuls:
        #   taps = w_hi@x_hi + w_lo@x_hi + w_hi@x_lo   (lo*lo term dropped)
        x_hi = x.astype(jnp.bfloat16)
        x_lo = (x - x_hi.astype(jnp.float32)).astype(jnp.bfloat16)
        a = jnp.dot(wc, x_hi, preferred_element_type=jnp.float32)      # (112, HW)
        blo = jnp.dot(w_hi, x_lo, preferred_element_type=jnp.float32)  # (56, HW)
        taps = a[0:_KP, :] + a[_KP:2 * _KP, :] + blo                   # (56, HW)

        # Stage 1: dy (row) shifts — one lane roll per dy on an aligned 8-row slab.
        #   acc1[dx, p] = sum_dy valid_row * taps[8*dy+dx, p + (dy-3)*W]
        acc1 = None
        for dy in range(7):
            s = (dy - 3) * W
            slab = taps[8 * dy:8 * dy + 8, :]                          # (8, HW), aligned
            if s != 0:
                slab = pltpu.roll(slab, (-s) % HW, 1)                  # out[p] = in[p + s]
            if dy != 3:
                slab = jnp.where(rmasks[dy], slab, 0.0)
            acc1 = slab if acc1 is None else acc1 + slab               # (8, HW)

        # Stage 2: dx (col) shifts — one lane roll per dx with column-edge masks.
        #   logit[p] = sum_dx valid_col * acc1[dx, p + (dx-3)]
        logit = None
        for dx in range(7):
            s = dx - 3
            r = acc1[dx:dx + 1, :]                                     # (1, HW)
            if s != 0:
                r = pltpu.roll(r, (-s) % HW, 1)
            if dx != 3:
                r = jnp.where(cmasks[dx], r, 0.0)
            logit = r if logit is None else logit + r                  # (1, HW)

        sa = jax.nn.sigmoid(logit + bias)                              # (1, HW)

        # ---- epilogue: x * channel_att * spatial_att (lane-dense store) ----
        ca = ca_ref[b]                                                 # (C, 1)
        o_ref[b] = x * ca * sa


def _pick_nb(n, per_image_bytes, target_bytes=1 << 20):
    """Largest divisor of n whose input block stays under ~1 MiB, while keeping
    >= 2 grid steps (when possible) so the parallel axis can span both v7x TCs."""
    nb = 1
    for d in range(2, n + 1):
        if n % d != 0:
            continue
        if d * per_image_bytes > target_bytes or n // d < 2:
            break
        nb = d
    return nb


def cbam_pallas(x_nchw, params):
    w1, b1, w2, b2, ws, bs = params
    N, C, H, W = x_nchw.shape
    Cr = w1.shape[0]
    HW = H * W
    x32 = x_nchw.astype(jnp.float32)
    hp = jax.lax.Precision.HIGHEST

    # ---- channel attention (global avg pool + tiny MLP) hoisted to XLA ----
    avg = jnp.mean(x32, axis=(2, 3))                                     # (N, C)
    hid = jax.nn.relu(jnp.dot(avg, w1.reshape(Cr, C).T, precision=hp) + b1)
    ca = jax.nn.sigmoid(jnp.dot(hid, w2.reshape(C, Cr).T, precision=hp) + b2)
    ca = ca[:, :, None]                                                  # (N, C, 1)

    # ---- NCHW-native: merge H,W into one lane-dense spatial axis (free reshape)
    x_flat = x32.reshape(N, C, HW)

    # 7x7 taps as a (56, C) matrix: row 8*dy + dx holds w7[dy, dx, :] (dx == 7 rows
    # are zero so every dy-group is an aligned 8-row slab); hi/lo stacked to (112, C).
    wt = jnp.transpose(ws.reshape(C, 7, 7).astype(jnp.float32), (1, 2, 0))  # (7,7,C)
    wt = jnp.pad(wt, ((0, 0), (0, 1), (0, 0))).reshape(_KP, C)             # (56, C)
    wt_hi = wt.astype(jnp.bfloat16)
    wt_lo = (wt - wt_hi.astype(jnp.float32)).astype(jnp.bfloat16)
    w_cat = jnp.concatenate([wt_hi, wt_lo], axis=0)                        # (112, C)

    pix = jnp.arange(HW, dtype=jnp.int32)
    row_ids = (pix // W).reshape(1, HW)
    col_ids = (pix % W).reshape(1, HW)
    bs1 = bs.reshape(1).astype(jnp.float32)

    per_image_bytes = C * HW * 4
    nb = _pick_nb(N, per_image_bytes)

    kernel = functools.partial(_cbam_kernel, H=H, W=W)

    grid_spec = pltpu.PrefetchScalarGridSpec(
        num_scalar_prefetch=0,
        grid=(N // nb,),
        in_specs=[
            pl.BlockSpec((nb, C, HW), lambda n: (n, 0, 0)),              # x
            pl.BlockSpec((nb, C, 1), lambda n: (n, 0, 0)),               # channel gate
            pl.BlockSpec((2 * _KP, C), lambda n: (0, 0)),                # taps hi|lo
            pl.BlockSpec((1, HW), lambda n: (0, 0)),                     # row ids
            pl.BlockSpec((1, HW), lambda n: (0, 0)),                     # col ids
            pl.BlockSpec(memory_space=pltpu.MemorySpace.SMEM),           # bias
        ],
        out_specs=pl.BlockSpec((nb, C, HW), lambda n: (n, 0, 0)),
    )

    # Double-buffered in+out blocks + weights + temporaries, capped below v7x's
    # 64 MiB physical per-TC VMEM.
    vmem_limit = min(48 * 1024 * 1024,
                     max(16 * 1024 * 1024, 8 * nb * per_image_bytes))

    out_flat = pl.pallas_call(
        kernel,
        out_shape=jax.ShapeDtypeStruct((N, C, HW), jnp.float32),
        grid_spec=grid_spec,
        compiler_params=pltpu.CompilerParams(
            dimension_semantics=("parallel",),
            vmem_limit_bytes=vmem_limit,
        ),
    )(x_flat, ca, w_cat, row_ids, col_ids, bs1)

    return out_flat.reshape(N, C, H, W)


def cbam_ref(x, params):
    """Pure-JAX reference matching the PyTorch module semantics (NCHW, f32)."""
    w1, b1, w2, b2, ws, bs = params
    N, C, H, W = x.shape
    Cr = w1.shape[0]
    hp = jax.lax.Precision.HIGHEST
    avg = jnp.mean(x, axis=(2, 3))                                       # (N, C)
    h = jax.nn.relu(jnp.dot(avg, w1.reshape(Cr, C).T, precision=hp) + b1)
    ca = jax.nn.sigmoid(jnp.dot(h, w2.reshape(C, Cr).T, precision=hp) + b2)
    sa_logit = jax.lax.conv_general_dilated(
        x, ws, window_strides=(1, 1), padding=((3, 3), (3, 3)),
        dimension_numbers=("NCHW", "OIHW", "NCHW"),
        precision=hp) + bs.reshape(1, 1, 1, 1)
    sa = jax.nn.sigmoid(sa_logit)                                        # (N, 1, H, W)
    return x * ca[:, :, None, None] * sa


def init_params(key, channels, reduction=16):
    cr = channels // reduction
    ks = jax.random.split(key, 6)
    w1 = jax.random.normal(ks[0], (cr, channels, 1, 1), jnp.float32) * 0.2
    b1 = jax.random.normal(ks[1], (cr,), jnp.float32) * 0.1
    w2 = jax.random.normal(ks[2], (channels, cr, 1, 1), jnp.float32) * 0.2
    b2 = jax.random.normal(ks[3], (channels,), jnp.float32) * 0.1
    ws = jax.random.normal(ks[4], (1, channels, 7, 7), jnp.float32) * 0.05
    bs = jax.random.normal(ks[5], (1,), jnp.float32) * 0.1
    return (w1, b1, w2, b2, ws, bs)


if __name__ == "__main__":
    key = jax.random.PRNGKey(0)
    kx, kp = jax.random.split(key)

    # channels must be >= reduction (=16) for the PyTorch module to be valid.
    N, C, H, W = 2, 32, 16, 16
    x = jax.random.normal(kx, (N, C, H, W), jnp.float32)
    params = init_params(kp, C, reduction=16)

    out = jax.jit(cbam_pallas)(x, params)
    out = jax.block_until_ready(out)

    ref = cbam_ref(x, params)
    np.testing.assert_allclose(np.asarray(out), np.asarray(ref), rtol=1e-4, atol=2e-5)
    print("KERNEL_OK")
</pallas_src>

<mosaic_0001>
module attributes {stable_mosaic.version = 11 : i64} {
  func.func @_cbam_kernel(%arg0: i32, %arg1: memref<1x32x256xf32, #tpu.memory_space<vmem>>, %arg2: memref<1x32x1xf32, #tpu.memory_space<vmem>>, %arg3: memref<112x32xbf16, #tpu.memory_space<vmem>>, %arg4: memref<1x256xi32, #tpu.memory_space<vmem>>, %arg5: memref<1x256xi32, #tpu.memory_space<vmem>>, %arg6: memref<1xf32, #tpu.memory_space<smem>>, %arg7: memref<1x32x256xf32, #tpu.memory_space<vmem>>) attributes {dimension_semantics = [#tpu.dimension_semantics<parallel>], iteration_bounds = array<i64: 2>, scalar_prefetch = 0 : i64, scratch_operands = 0 : i64, tpu.core_type = #tpu.core_type<tc>, window_params = [{transform_indices = @transform_0, window_bounds = array<i64: 1, 32, 256>}, {transform_indices = @transform_1, window_bounds = array<i64: 1, 32, 1>}, {pipeline_mode = #tpu.pipeline_mode<synchronous>, transform_indices = @transform_2, window_bounds = array<i64: 112, 32>}, {pipeline_mode = #tpu.pipeline_mode<synchronous>, transform_indices = @transform_3, window_bounds = array<i64: 1, 256>}, {pipeline_mode = #tpu.pipeline_mode<synchronous>, transform_indices = @transform_4, window_bounds = array<i64: 1, 256>}, {transform_indices = @transform_5, window_bounds = array<i64: 1>}, {transform_indices = @transform_6, window_bounds = array<i64: 1, 32, 256>}]} {
    %c0 = arith.constant 0 : index
    %c0_0 = arith.constant 0 : index
    %0 = vector.load %arg4[%c0, %c0_0] : memref<1x256xi32, #tpu.memory_space<vmem>>, vector<1x256xi32>
    %c0_1 = arith.constant 0 : index
    %c0_2 = arith.constant 0 : index
    %1 = vector.load %arg5[%c0_1, %c0_2] : memref<1x256xi32, #tpu.memory_space<vmem>>, vector<1x256xi32>
    %c0_3 = arith.constant 0 : index
    %c0_4 = arith.constant 0 : index
    %2 = vector.load %arg3[%c0_3, %c0_4] : memref<112x32xbf16, #tpu.memory_space<vmem>>, vector<112x32xbf16>
    %c0_5 = arith.constant 0 : index
    %c0_6 = arith.constant 0 : index
    %3 = vector.load %arg3[%c0_5, %c0_6] : memref<112x32xbf16, #tpu.memory_space<vmem>>, vector<56x32xbf16>
    %c0_7 = arith.constant 0 : index
    %4 = memref.load %arg6[%c0_7] : memref<1xf32, #tpu.memory_space<smem>>
    %c3_i32 = arith.constant 3 : i32
    %5 = vector.broadcast %c3_i32 : i32 to vector<1x256xi32>
    %6 = arith.cmpi sge, %0, %5 : vector<1x256xi32>
    %c18_i32 = arith.constant 18 : i32
    %7 = vector.broadcast %c18_i32 : i32 to vector<1x256xi32>
    %8 = arith.cmpi sle, %0, %7 : vector<1x256xi32>
    %9 = arith.andi %6, %8 : vector<1x256xi1>
    %c2_i32 = arith.constant 2 : i32
    %10 = vector.broadcast %c2_i32 : i32 to vector<1x256xi32>
    %11 = arith.cmpi sge, %0, %10 : vector<1x256xi32>
    %c17_i32 = arith.constant 17 : i32
    %12 = vector.broadcast %c17_i32 : i32 to vector<1x256xi32>
    %13 = arith.cmpi sle, %0, %12 : vector<1x256xi32>
    %14 = arith.andi %11, %13 : vector<1x256xi1>
    %c1_i32 = arith.constant 1 : i32
    %15 = vector.broadcast %c1_i32 : i32 to vector<1x256xi32>
    %16 = arith.cmpi sge, %0, %15 : vector<1x256xi32>
    %c16_i32 = arith.constant 16 : i32
    %17 = vector.broadcast %c16_i32 : i32 to vector<1x256xi32>
    %18 = arith.cmpi sle, %0, %17 : vector<1x256xi32>
    %19 = arith.andi %16, %18 : vector<1x256xi1>
    %c-1_i32 = arith.constant -1 : i32
    %20 = vector.broadcast %c-1_i32 : i32 to vector<1x256xi32>
    %21 = arith.cmpi sge, %0, %20 : vector<1x256xi32>
    %c14_i32 = arith.constant 14 : i32
    %22 = vector.broadcast %c14_i32 : i32 to vector<1x256xi32>
    %23 = arith.cmpi sle, %0, %22 : vector<1x256xi32>
    %24 = arith.andi %21, %23 : vector<1x256xi1>
    %c-2_i32 = arith.constant -2 : i32
    %25 = vector.broadcast %c-2_i32 : i32 to vector<1x256xi32>
    %26 = arith.cmpi sge, %0, %25 : vector<1x256xi32>
    %c13_i32 = arith.constant 13 : i32
    %27 = vector.broadcast %c13_i32 : i32 to vector<1x256xi32>
    %28 = arith.cmpi sle, %0, %27 : vector<1x256xi32>
    %29 = arith.andi %26, %28 : vector<1x256xi1>
    %c-3_i32 = arith.constant -3 : i32
    %30 = vector.broadcast %c-3_i32 : i32 to vector<1x256xi32>
    %31 = arith.cmpi sge, %0, %30 : vector<1x256xi32>
    %c12_i32 = arith.constant 12 : i32
    %32 = vector.broadcast %c12_i32 : i32 to vector<1x256xi32>
    %33 = arith.cmpi sle, %0, %32 : vector<1x256xi32>
    %34 = arith.andi %31, %33 : vector<1x256xi1>
    %c3_i32_8 = arith.constant 3 : i32
    %35 = vector.broadcast %c3_i32_8 : i32 to vector<1x256xi32>
    %36 = arith.cmpi sge, %1, %35 : vector<1x256xi32>
    %c18_i32_9 = arith.constant 18 : i32
    %37 = vector.broadcast %c18_i32_9 : i32 to vector<1x256xi32>
    %38 = arith.cmpi sle, %1, %37 : vector<1x256xi32>
    %39 = arith.andi %36, %38 : vector<1x256xi1>
    %c2_i32_10 = arith.constant 2 : i32
    %40 = vector.broadcast %c2_i32_10 : i32 to vector<1x256xi32>
    %41 = arith.cmpi sge, %1, %40 : vector<1x256xi32>
    %c17_i32_11 = arith.constant 17 : i32
    %42 = vector.broadcast %c17_i32_11 : i32 to vector<1x256xi32>
    %43 = arith.cmpi sle, %1, %42 : vector<1x256xi32>
    %44 = arith.andi %41, %43 : vector<1x256xi1>
    %c1_i32_12 = arith.constant 1 : i32
    %45 = vector.broadcast %c1_i32_12 : i32 to vector<1x256xi32>
    %46 = arith.cmpi sge, %1, %45 : vector<1x256xi32>
    %c16_i32_13 = arith.constant 16 : i32
    %47 = vector.broadcast %c16_i32_13 : i32 to vector<1x256xi32>
    %48 = arith.cmpi sle, %1, %47 : vector<1x256xi32>
    %49 = arith.andi %46, %48 : vector<1x256xi1>
    %c-1_i32_14 = arith.constant -1 : i32
    %50 = vector.broadcast %c-1_i32_14 : i32 to vector<1x256xi32>
    %51 = arith.cmpi sge, %1, %50 : vector<1x256xi32>
    %c14_i32_15 = arith.constant 14 : i32
    %52 = vector.broadcast %c14_i32_15 : i32 to vector<1x256xi32>
    %53 = arith.cmpi sle, %1, %52 : vector<1x256xi32>
    %54 = arith.andi %51, %53 : vector<1x256xi1>
    %c-2_i32_16 = arith.constant -2 : i32
    %55 = vector.broadcast %c-2_i32_16 : i32 to vector<1x256xi32>
    %56 = arith.cmpi sge, %1, %55 : vector<1x256xi32>
    %c13_i32_17 = arith.constant 13 : i32
    %57 = vector.broadcast %c13_i32_17 : i32 to vector<1x256xi32>
    %58 = arith.cmpi sle, %1, %57 : vector<1x256xi32>
    %59 = arith.andi %56, %58 : vector<1x256xi1>
    %c-3_i32_18 = arith.constant -3 : i32
    %60 = vector.broadcast %c-3_i32_18 : i32 to vector<1x256xi32>
    %61 = arith.cmpi sge, %1, %60 : vector<1x256xi32>
    %c12_i32_19 = arith.constant 12 : i32
    %62 = vector.broadcast %c12_i32_19 : i32 to vector<1x256xi32>
    %63 = arith.cmpi sle, %1, %62 : vector<1x256xi32>
    %64 = arith.andi %61, %63 : vector<1x256xi1>
    %c0_20 = arith.constant 0 : index
    %c0_21 = arith.constant 0 : index
    %c0_22 = arith.constant 0 : index
    %65 = vector.load %arg1[%c0_20, %c0_21, %c0_22] : memref<1x32x256xf32, #tpu.memory_space<vmem>>, vector<1x32x256xf32>
    %66 = vector.shape_cast %65 : vector<1x32x256xf32> to vector<32x256xf32>
    %67 = arith.truncf %66 : vector<32x256xf32> to vector<32x256xbf16>
    %68 = arith.extf %67 : vector<32x256xbf16> to vector<32x256xf32>
    %69 = arith.subf %66, %68 : vector<32x256xf32>
    %70 = arith.truncf %69 : vector<32x256xf32> to vector<32x256xbf16>
    %cst = arith.constant dense<0.000000e+00> : vector<112x256xf32>
    %71 = tpu.matmul %2, %67, %cst {dimension_numbers = #tpu.dot_dimension_numbers<[1], [0], [0], [1], [0, 0, 1, 1], [], []>} : vector<112x32xbf16>, vector<32x256xbf16>, vector<112x256xf32> -> vector<112x256xf32>
    %cst_23 = arith.constant dense<0.000000e+00> : vector<56x256xf32>
    %72 = tpu.matmul %3, %70, %cst_23 {dimension_numbers = #tpu.dot_dimension_numbers<[1], [0], [0], [1], [0, 0, 1, 1], [], []>} : vector<56x32xbf16>, vector<32x256xbf16>, vector<56x256xf32> -> vector<56x256xf32>
    %73 = vector.extract_strided_slice %71 {offsets = [0, 0], sizes = [56, 256], strides = [1, 1]} : vector<112x256xf32> to vector<56x256xf32>
    %74 = vector.extract_strided_slice %71 {offsets = [56, 0], sizes = [56, 256], strides = [1, 1]} : vector<112x256xf32> to vector<56x256xf32>
    %75 = arith.addf %73, %74 : vector<56x256xf32>
    %76 = arith.addf %75, %72 : vector<56x256xf32>
    %77 = vector.extract_strided_slice %76 {offsets = [0, 0], sizes = [8, 256], strides = [1, 1]} : vector<56x256xf32> to vector<8x256xf32>
    %c48_i32 = arith.constant 48 : i32
    %78 = tpu.dynamic_rotate %77 by %c48_i32 dim 1 : vector<8x256xf32>, i32 -> vector<8x256xf32>
    %cst_24 = arith.constant 0.000000e+00 : f32
    %79 = vector.shape_cast %9 : vector<1x256xi1> to vector<1x256xi1>
    %80 = vector.broadcast %79 : vector<1x256xi1> to vector<8x256xi1>
    %81 = vector.broadcast %cst_24 : f32 to vector<8x256xf32>
    %82 = arith.select %80, %78, %81 : vector<8x256xi1>, vector<8x256xf32>
    %83 = vector.extract_strided_slice %76 {offsets = [8, 0], sizes = [8, 256], strides = [1, 1]} : vector<56x256xf32> to vector<8x256xf32>
    %c32_i32 = arith.constant 32 : i32
    %84 = tpu.dynamic_rotate %83 by %c32_i32 dim 1 : vector<8x256xf32>, i32 -> vector<8x256xf32>
    %cst_25 = arith.constant 0.000000e+00 : f32
    %85 = vector.shape_cast %14 : vector<1x256xi1> to vector<1x256xi1>
    %86 = vector.broadcast %85 : vector<1x256xi1> to vector<8x256xi1>
    %87 = vector.broadcast %cst_25 : f32 to vector<8x256xf32>
    %88 = arith.select %86, %84, %87 : vector<8x256xi1>, vector<8x256xf32>
    %89 = arith.addf %82, %88 : vector<8x256xf32>
    %90 = vector.extract_strided_slice %76 {offsets = [16, 0], sizes = [8, 256], strides = [1, 1]} : vector<56x256xf32> to vector<8x256xf32>
    %c16_i32_26 = arith.constant 16 : i32
    %91 = tpu.dynamic_rotate %90 by %c16_i32_26 dim 1 : vector<8x256xf32>, i32 -> vector<8x256xf32>
    %cst_27 = arith.constant 0.000000e+00 : f32
    %92 = vector.shape_cast %19 : vector<1x256xi1> to vector<1x256xi1>
    %93 = vector.broadcast %92 : vector<1x256xi1> to vector<8x256xi1>
    %94 = vector.broadcast %cst_27 : f32 to vector<8x256xf32>
    %95 = arith.select %93, %91, %94 : vector<8x256xi1>, vector<8x256xf32>
    %96 = arith.addf %89, %95 : vector<8x256xf32>
    %97 = vector.extract_strided_slice %76 {offsets = [24, 0], sizes = [8, 256], strides = [1, 1]} : vector<56x256xf32> to vector<8x256xf32>
    %98 = arith.addf %96, %97 : vector<8x256xf32>
    %99 = vector.extract_strided_slice %76 {offsets = [32, 0], sizes = [8, 256], strides = [1, 1]} : vector<56x256xf32> to vector<8x256xf32>
    %c240_i32 = arith.constant 240 : i32
    %100 = tpu.dynamic_rotate %99 by %c240_i32 dim 1 : vector<8x256xf32>, i32 -> vector<8x256xf32>
    %cst_28 = arith.constant 0.000000e+00 : f32
    %101 = vector.shape_cast %24 : vector<1x256xi1> to vector<1x256xi1>
    %102 = vector.broadcast %101 : vector<1x256xi1> to vector<8x256xi1>
    %103 = vector.broadcast %cst_28 : f32 to vector<8x256xf32>
    %104 = arith.select %102, %100, %103 : vector<8x256xi1>, vector<8x256xf32>
    %105 = arith.addf %98, %104 : vector<8x256xf32>
    %106 = vector.extract_strided_slice %76 {offsets = [40, 0], sizes = [8, 256], strides = [1, 1]} : vector<56x256xf32> to vector<8x256xf32>
    %c224_i32 = arith.constant 224 : i32
    %107 = tpu.dynamic_rotate %106 by %c224_i32 dim 1 : vector<8x256xf32>, i32 -> vector<8x256xf32>
    %cst_29 = arith.constant 0.000000e+00 : f32
    %108 = vector.shape_cast %29 : vector<1x256xi1> to vector<1x256xi1>
    %109 = vector.broadcast %108 : vector<1x256xi1> to vector<8x256xi1>
    %110 = vector.broadcast %cst_29 : f32 to vector<8x256xf32>
    %111 = arith.select %109, %107, %110 : vector<8x256xi1>, vector<8x256xf32>
    %112 = arith.addf %105, %111 : vector<8x256xf32>
    %113 = vector.extract_strided_slice %76 {offsets = [48, 0], sizes = [8, 256], strides = [1, 1]} : vector<56x256xf32> to vector<8x256xf32>
    %c208_i32 = arith.constant 208 : i32
    %114 = tpu.dynamic_rotate %113 by %c208_i32 dim 1 : vector<8x256xf32>, i32 -> vector<8x256xf32>
    %cst_30 = arith.constant 0.000000e+00 : f32
    %115 = vector.shape_cast %34 : vector<1x256xi1> to vector<1x256xi1>
    %116 = vector.broadcast %115 : vector<1x256xi1> to vector<8x256xi1>
    %117 = vector.broadcast %cst_30 : f32 to vector<8x256xf32>
    %118 = arith.select %116, %114, %117 : vector<8x256xi1>, vector<8x256xf32>
    %119 = arith.addf %112, %118 : vector<8x256xf32>
    %120 = vector.extract_strided_slice %119 {offsets = [0, 0], sizes = [1, 256], strides = [1, 1]} : vector<8x256xf32> to vector<1x256xf32>
    %c3_i32_31 = arith.constant 3 : i32
    %121 = tpu.dynamic_rotate %120 by %c3_i32_31 dim 1 : vector<1x256xf32>, i32 -> vector<1x256xf32>
    %cst_32 = arith.constant 0.000000e+00 : f32
    %122 = vector.broadcast %cst_32 : f32 to vector<1x256xf32>
    %123 = arith.select %39, %121, %122 : vector<1x256xi1>, vector<1x256xf32>
    %124 = vector.extract_strided_slice %119 {offsets = [1, 0], sizes = [1, 256], strides = [1, 1]} : vector<8x256xf32> to vector<1x256xf32>
    %c2_i32_33 = arith.constant 2 : i32
    %125 = tpu.dynamic_rotate %124 by %c2_i32_33 dim 1 : vector<1x256xf32>, i32 -> vector<1x256xf32>
    %cst_34 = arith.constant 0.000000e+00 : f32
    %126 = vector.broadcast %cst_34 : f32 to vector<1x256xf32>
    %127 = arith.select %44, %125, %126 : vector<1x256xi1>, vector<1x256xf32>
    %128 = arith.addf %123, %127 : vector<1x256xf32>
    %129 = vector.extract_strided_slice %119 {offsets = [2, 0], sizes = [1, 256], strides = [1, 1]} : vector<8x256xf32> to vector<1x256xf32>
    %c1_i32_35 = arith.constant 1 : i32
    %130 = tpu.dynamic_rotate %129 by %c1_i32_35 dim 1 : vector<1x256xf32>, i32 -> vector<1x256xf32>
    %cst_36 = arith.constant 0.000000e+00 : f32
    %131 = vector.broadcast %cst_36 : f32 to vector<1x256xf32>
    %132 = arith.select %49, %130, %131 : vector<1x256xi1>, vector<1x256xf32>
    %133 = arith.addf %128, %132 : vector<1x256xf32>
    %134 = vector.extract_strided_slice %119 {offsets = [3, 0], sizes = [1, 256], strides = [1, 1]} : vector<8x256xf32> to vector<1x256xf32>
    %135 = arith.addf %133, %134 : vector<1x256xf32>
    %136 = vector.extract_strided_slice %119 {offsets = [4, 0], sizes = [1, 256], strides = [1, 1]} : vector<8x256xf32> to vector<1x256xf32>
    %c255_i32 = arith.constant 255 : i32
    %137 = tpu.dynamic_rotate %136 by %c255_i32 dim 1 : vector<1x256xf32>, i32 -> vector<1x256xf32>
    %cst_37 = arith.constant 0.000000e+00 : f32
    %138 = vector.broadcast %cst_37 : f32 to vector<1x256xf32>
    %139 = arith.select %54, %137, %138 : vector<1x256xi1>, vector<1x256xf32>
    %140 = arith.addf %135, %139 : vector<1x256xf32>
    %141 = vector.extract_strided_slice %119 {offsets = [5, 0], sizes = [1, 256], strides = [1, 1]} : vector<8x256xf32> to vector<1x256xf32>
    %c254_i32 = arith.constant 254 : i32
    %142 = tpu.dynamic_rotate %141 by %c254_i32 dim 1 : vector<1x256xf32>, i32 -> vector<1x256xf32>
    %cst_38 = arith.constant 0.000000e+00 : f32
    %143 = vector.broadcast %cst_38 : f32 to vector<1x256xf32>
    %144 = arith.select %59, %142, %143 : vector<1x256xi1>, vector<1x256xf32>
    %145 = arith.addf %140, %144 : vector<1x256xf32>
    %146 = vector.extract_strided_slice %119 {offsets = [6, 0], sizes = [1, 256], strides = [1, 1]} : vector<8x256xf32> to vector<1x256xf32>
    %c253_i32 = arith.constant 253 : i32
    %147 = tpu.dynamic_rotate %146 by %c253_i32 dim 1 : vector<1x256xf32>, i32 -> vector<1x256xf32>
    %cst_39 = arith.constant 0.000000e+00 : f32
    %148 = vector.broadcast %cst_39 : f32 to vector<1x256xf32>
    %149 = arith.select %64, %147, %148 : vector<1x256xi1>, vector<1x256xf32>
    %150 = arith.addf %145, %149 : vector<1x256xf32>
    %151 = vector.broadcast %4 : f32 to vector<1x256xf32>
    %152 = arith.addf %150, %151 : vector<1x256xf32>
    %153 = arith.negf %152 : vector<1x256xf32>
    %154 = math.exp %153 : vector<1x256xf32>
    %cst_40 = arith.constant 1.000000e+00 : f32
    %155 = vector.broadcast %cst_40 : f32 to vector<1x256xf32>
    %156 = arith.addf %155, %154 : vector<1x256xf32>
    %157 = arith.divf %155, %156 : vector<1x256xf32>
    %c0_41 = arith.constant 0 : index
    %c0_42 = arith.constant 0 : index
    %c0_43 = arith.constant 0 : index
    %158 = vector.load %arg2[%c0_41, %c0_42, %c0_43] : memref<1x32x1xf32, #tpu.memory_space<vmem>>, vector<1x32x1xf32>
    %159 = vector.shape_cast %158 : vector<1x32x1xf32> to vector<32x1xf32>
    %160 = vector.broadcast %159 : vector<32x1xf32> to vector<32x256xf32>
    %161 = arith.mulf %66, %160 : vector<32x256xf32>
    %162 = vector.broadcast %157 : vector<1x256xf32> to vector<32x256xf32>
    %163 = arith.mulf %161, %162 : vector<32x256xf32>
    %c0_44 = arith.constant 0 : index
    %c0_45 = arith.constant 0 : index
    %c0_46 = arith.constant 0 : index
    %164 = vector.load %arg7[%c0_44, %c0_45, %c0_46] : memref<1x32x256xf32, #tpu.memory_space<vmem>>, vector<1x32x256xf32>
    %165 = vector.shape_cast %164 : vector<1x32x256xf32> to vector<32x256xf32>
    %166 = vector.shape_cast %163 : vector<32x256xf32> to vector<1x32x256xf32>
    tpu.vector_store %arg7[%c0_44, %c0_45, %c0_46], %166 {strides = array<i32>} : memref<1x32x256xf32, #tpu.memory_space<vmem>>, vector<1x32x256xf32>,
    return
  }
  func.func @transform_0(%arg0: i32) -> (i32, i32, i32) {
    %c0_i32 = arith.constant 0 : i32
    %c0_i32_0 = arith.constant 0 : i32
    %c0_i32_1 = arith.constant 0 : i32
    return %arg0, %c0_i32, %c0_i32_0 : i32, i32, i32
  }
  func.func @transform_1(%arg0: i32) -> (i32, i32, i32) {
    %c0_i32 = arith.constant 0 : i32
    %c0_i32_0 = arith.constant 0 : i32
    %c0_i32_1 = arith.constant 0 : i32
    return %arg0, %c0_i32, %c0_i32_0 : i32, i32, i32
  }
  func.func @transform_2(%arg0: i32) -> (i32, i32) {
    %c0_i32 = arith.constant 0 : i32
    %c0_i32_0 = arith.constant 0 : i32
    %c0_i32_1 = arith.constant 0 : i32
    return %c0_i32, %c0_i32_0 : i32, i32
  }
  func.func @transform_3(%arg0: i32) -> (i32, i32) {
    %c0_i32 = arith.constant 0 : i32
    %c0_i32_0 = arith.constant 0 : i32
    %c0_i32_1 = arith.constant 0 : i32
    return %c0_i32, %c0_i32_0 : i32, i32
  }
  func.func @transform_4(%arg0: i32) -> (i32, i32) {
    %c0_i32 = arith.constant 0 : i32
    %c0_i32_0 = arith.constant 0 : i32
    %c0_i32_1 = arith.constant 0 : i32
    return %c0_i32, %c0_i32_0 : i32, i32
  }
  func.func @transform_5(%arg0: i32) -> i32 {
    %c0_i32 = arith.constant 0 : i32
    %c0_i32_0 = arith.constant 0 : i32
    return %c0_i32 : i32
  }
  func.func @transform_6(%arg0: i32) -> (i32, i32, i32) {
    %c0_i32 = arith.constant 0 : i32
    %c0_i32_0 = arith.constant 0 : i32
    %c0_i32_1 = arith.constant 0 : i32
    return %arg0, %c0_i32, %c0_i32_0 : i32, i32, i32
  }
}

</mosaic_0001>

<llo_original>
// kernel: cbam_pallas.1
$region0: #{cbam_pallas.1}
  #allocation0 [shape = 'u32[]', space=smem, size = 0x4, offset = 0x4, fixed_abs, tag = 'smem constant byte address 0x4 - core index']
  #allocation1 [shape = 'u32[72,128]{1,0:T(1,128)}', space=vmem, size = 0x9000, scoped, tag = 'internal scratch']
  #allocation2 [shape = 'f32[1]{0:T(128)S(6)}', space=smem, size = 0x200, scoped, tag = 'scoped memory for cbam_pallas.1']
  %s0 = inlined_call_operand.vmem [shape: f32[2,32,256], index: 0, kind: input, shape index: {}]
  %s1 = inlined_call_operand.vmem [shape: f32[2,32,1], index: 1, kind: input, shape index: {}]
  %s2 = inlined_call_operand.vmem [shape: bf16[112,32], index: 2, kind: input, shape index: {}]
  %s3 = inlined_call_operand.vmem [shape: s32[1,256], index: 3, kind: input, shape index: {}]
  %s4 = inlined_call_operand.vmem [shape: s32[1,256], index: 4, kind: input, shape index: {}]
  %s5 = inlined_call_operand.<no memory space> [shape: f32[1], index: 5, kind: input, shape index: {}]
  %s6 = inlined_call_operand.vmem [shape: f32[2,32,256], index: 6, kind: output, shape index: {}]
  %s7 = sld [smem:[#allocation0]]
  $region57: #{cbam_pallas.1} parent=0
    _
  %s9 = ssub.s32 1, %s7
  %s10 = scalar_select 0, %s9, %s7
  %11 = sst [smem:[#allocation2]] %s5
  loop: start=0, step=1, limit=4
  $region2: #{cbam_pallas.1} parent=0 // loop_pre_header
    _
  $region3: #{cbam_pallas.1} parent=0 // loop_header
    %s13 = sphi 0, %s17
    %p14 = scmp.ge.s32.totalorder %s13, 4
    %s23 = sphi 0, %s25
    %s26 = sphi 0, %s23
    %s27 = sphi 0, %s26
    %s43 = sphi 0, %s27
    %s49 = sphi 0, %s51
    %s52 = sphi 0, %s49
    %s53 = sphi 0, %s52
    %s69 = sphi 0, %s53
    %s73 = sphi 0, %s73
    %s75 = sphi 0, %s73
    %s76 = sphi 0, %s75
    %s90 = sphi 0, %s76
    %s94 = sphi 0, %s94
    %s96 = sphi 0, %s94
    %s97 = sphi 0, %s96
    %s111 = sphi 0, %s97
    %s115 = sphi 0, %s115
    %s117 = sphi 0, %s115
    %s118 = sphi 0, %s117
    %s132 = sphi 0, %s118
    %s136 = sphi 0, %s136
    %s138 = sphi 0, %s136
    %s139 = sphi 0, %s138
    %s153 = sphi 0, %s139
    %s159 = sphi 0, %s161
    %s162 = sphi 0, %s159
    %s163 = sphi 0, %s162
    %s179 = sphi 0, %s163
  $region4: #{cbam_pallas.1} parent=0 // loop_header_branch
    %16 = sbr.rel (%p14) target = $region8
  $region5: #{cbam_pallas.1} parent=0 // loop_body
    %s18 = ssub.s32 %s13, 1
    %s19 = ssub.s32 %s13, 2
    %s20 = sadd.s32 %s13, 1
    %s21 = ssub.s32 %s13, %s20
    %p22 = scmp.eq.s32.totalorder %s21, 0
    %s24 = sadd.s32 %s23, 1
    %s25 = scalar_select %p22, %s23, %s24
    %p28 = pneg %p22
    %p29 = scmp.eq.s32.totalorder %s13, 1
    %p30 = por %p28, %p29
    %p31 = scmp.ne.s32.totalorder %s23, %s26
    %p32 = scmp.eq.s32.totalorder %s13, 0
    %p33 = por %p31, %p32
    %p34 = scmp.ne.s32.totalorder %s23, %s26
    %p35 = scmp.eq.s32.totalorder %s18, 1
    %p36 = por %p34, %p35
    %p37 = scmp.ne.s32.totalorder %s26, %s27
    %p38 = scmp.eq.s32.totalorder %s18, 0
    %p39 = por %p37, %p38
    %p40 = scmp.ne.s32.totalorder %s26, %s27
    %p41 = scmp.eq.s32.totalorder %s19, 1
    %p42 = por %p40, %p41
    %p44 = scmp.ne.s32.totalorder %s27, %s43
    %p45 = scmp.eq.s32.totalorder %s19, 0
    %p46 = por %p44, %p45
    %s47 = ssub.s32 %s13, %s20
    %p48 = scmp.eq.s32.totalorder %s47, 0
    %s50 = sadd.s32 %s49, 1
    %s51 = scalar_select %p48, %s49, %s50
    %p54 = pneg %p48
    %p55 = scmp.eq.s32.totalorder %s13, 1
    %p56 = por %p54, %p55
    %p57 = scmp.ne.s32.totalorder %s49, %s52
    %p58 = scmp.eq.s32.totalorder %s13, 0
    %p59 = por %p57, %p58
    %p60 = scmp.ne.s32.totalorder %s49, %s52
    %p61 = scmp.eq.s32.totalorder %s18, 1
    %p62 = por %p60, %p61
    %p63 = scmp.ne.s32.totalorder %s52, %s53
    %p64 = scmp.eq.s32.totalorder %s18, 0
    %p65 = por %p63, %p64
    %p66 = scmp.ne.s32.totalorder %s52, %s53
    %p67 = scmp.eq.s32.totalorder %s19, 1
    %p68 = por %p66, %p67
    %p70 = scmp.ne.s32.totalorder %s53, %s69
    %p71 = scmp.eq.s32.totalorder %s19, 0
    %p72 = por %p70, %p71
    %s74 = sadd.s32 %s73, 1
    %p77 = scmp.eq.s32.totalorder %s13, 1
    %p78 = scmp.ne.s32.totalorder %s73, %s75
    %p79 = scmp.eq.s32.totalorder %s13, 0
    %p80 = por %p78, %p79
    %p81 = scmp.ne.s32.totalorder %s73, %s75
    %p82 = scmp.eq.s32.totalorder %s18, 1
    %p83 = por %p81, %p82
    %p84 = scmp.ne.s32.totalorder %s75, %s76
    %p85 = scmp.eq.s32.totalorder %s18, 0
    %p86 = por %p84, %p85
    %p87 = scmp.ne.s32.totalorder %s75, %s76
    %p88 = scmp.eq.s32.totalorder %s19, 1
    %p89 = por %p87, %p88
    %p91 = scmp.ne.s32.totalorder %s76, %s90
    %p92 = scmp.eq.s32.totalorder %s19, 0
    %p93 = por %p91, %p92
    %s95 = sadd.s32 %s94, 1
    %p98 = scmp.eq.s32.totalorder %s13, 1
    %p99 = scmp.ne.s32.totalorder %s94, %s96
    %p100 = scmp.eq.s32.totalorder %s13, 0
    %p101 = por %p99, %p100
    %p102 = scmp.ne.s32.totalorder %s94, %s96
    %p103 = scmp.eq.s32.totalorder %s18, 1
    %p104 = por %p102, %p103
    %p105 = scmp.ne.s32.totalorder %s96, %s97
    %p106 = scmp.eq.s32.totalorder %s18, 0
    %p107 = por %p105, %p106
    %p108 = scmp.ne.s32.totalorder %s96, %s97
    %p109 = scmp.eq.s32.totalorder %s19, 1
    %p110 = por %p108, %p109
    %p112 = scmp.ne.s32.totalorder %s97, %s111
    %p113 = scmp.eq.s32.totalorder %s19, 0
    %p114 = por %p112, %p113
    %s116 = sadd.s32 %s115, 1
    %p119 = scmp.eq.s32.totalorder %s13, 1
    %p120 = scmp.ne.s32.totalorder %s115, %s117
    %p121 = scmp.eq.s32.totalorder %s13, 0
    %p122 = por %p120, %p121
    %p123 = scmp.ne.s32.totalorder %s115, %s117
    %p124 = scmp.eq.s32.totalorder %s18, 1
    %p125 = por %p123, %p124
    %p126 = scmp.ne.s32.totalorder %s117, %s118
    %p127 = scmp.eq.s32.totalorder %s18, 0
    %p128 = por %p126, %p127
    %p129 = scmp.ne.s32.totalorder %s117, %s118
    %p130 = scmp.eq.s32.totalorder %s19, 1
    %p131 = por %p129, %p130
    %p133 = scmp.ne.s32.totalorder %s118, %s132
    %p134 = scmp.eq.s32.totalorder %s19, 0
    %p135 = por %p133, %p134
    %s137 = sadd.s32 %s136, 1
    %p140 = scmp.eq.s32.totalorder %s13, 1
    %p141 = scmp.ne.s32.totalorder %s136, %s138
    %p142 = scmp.eq.s32.totalorder %s13, 0
    %p143 = por %p141, %p142
    %p144 = scmp.ne.s32.totalorder %s136, %s138
    %p145 = scmp.eq.s32.totalorder %s18, 1
    %p146 = por %p144, %p145
    %p147 = scmp.ne.s32.totalorder %s138, %s139
    %p148 = scmp.eq.s32.totalorder %s18, 0
    %p149 = por %p147, %p148
    %p150 = scmp.ne.s32.totalorder %s138, %s139
    %p151 = scmp.eq.s32.totalorder %s19, 1
    %p152 = por %p150, %p151
    %p154 = scmp.ne.s32.totalorder %s139, %s153
    %p155 = scmp.eq.s32.totalorder %s19, 0
    %p156 = por %p154, %p155
    %s157 = ssub.s32 %s13, %s20
    %p158 = scmp.eq.s32.totalorder %s157, 0
    %s160 = sadd.s32 %s159, 1
    %s161 = scalar_select %p158, %s159, %s160
    %p164 = pneg %p158
    %p165 = scmp.eq.s32.totalorder %s13, 1
    %p166 = por %p164, %p165
    %p167 = scmp.ne.s32.totalorder %s159, %s162
    %p168 = scmp.eq.s32.totalorder %s13, 0
    %p169 = por %p167, %p168
    %p170 = scmp.ne.s32.totalorder %s159, %s162
    %p171 = scmp.eq.s32.totalorder %s18, 1
    %p172 = por %p170, %p171
    %p173 = scmp.ne.s32.totalorder %s162, %s163
    %p174 = scmp.eq.s32.totalorder %s18, 0
    %p175 = por %p173, %p174
    %p176 = scmp.ne.s32.totalorder %s162, %s163
    %p177 = scmp.eq.s32.totalorder %s19, 1
    %p178 = por %p176, %p177
    %p180 = scmp.ne.s32.totalorder %s163, %s179
    %p181 = scmp.eq.s32.totalorder %s19, 0
    %p182 = por %p180, %p181
    %p183 = scmp.le.s32.totalorder 1, %s13
    %p184 = scmp.lt.s32.totalorder %s13, 3
    %p185 = pnand %p183, %p184
    %p186 = pneg %p185
    // Predicated region
    $region9: #{cbam_pallas.1} parent=5 // pred_check
      _
    $region10: #{cbam_pallas.1} parent=5 // pred_check_branch
      %188 = sbr.rel (%p185) target = $region12
    $region11: #{cbam_pallas.1} parent=5 // pred_region
      %s189 = ssub.s32 %s13, 1
      // Predicated region
      $region13: #{cbam_pallas.1} parent=11 // pred_check
        %p190 = pneg %p86
      $region14: #{cbam_pallas.1} parent=11 // pred_check_branch
        %192 = sbr.rel (%p190) target = $region16
      $region15: #{cbam_pallas.1} parent=11 // pred_region
        _
      $region16: #{cbam_pallas.1} parent=11 // pred_fallthru
        _
      // Predicated region
      $region17: #{cbam_pallas.1} parent=11 // pred_check
        %p193 = pneg %p107
      $region18: #{cbam_pallas.1} parent=11 // pred_check_branch
        %195 = sbr.rel (%p193) target = $region20
      $region19: #{cbam_pallas.1} parent=11 // pred_region
        _
      $region20: #{cbam_pallas.1} parent=11 // pred_fallthru
        _
      // Predicated region
      $region21: #{cbam_pallas.1} parent=11 // pred_check
        %p196 = pneg %p128
      $region22: #{cbam_pallas.1} parent=11 // pred_check_branch
        %198 = sbr.rel (%p196) target = $region24
      $region23: #{cbam_pallas.1} parent=11 // pred_region
        _
      $region24: #{cbam_pallas.1} parent=11 // pred_fallthru
        _
      // Predicated region
      $region25: #{cbam_pallas.1} parent=11 // pred_check
        %p199 = pneg %p149
      $region26: #{cbam_pallas.1} parent=11 // pred_check_branch
        %201 = sbr.rel (%p199) target = $region28
      $region27: #{cbam_pallas.1} parent=11 // pred_region
        _
      $region28: #{cbam_pallas.1} parent=11 // pred_fallthru
        _
    $region12: #{cbam_pallas.1} parent=5 // pred_fallthru
      _
    %p202 = scmp.lt.s32.totalorder %s13, 2
    // Predicated region
    $region29: #{cbam_pallas.1} parent=5 // pred_check
      %p203 = pneg %p202
    $region30: #{cbam_pallas.1} parent=5 // pred_check_branch
      %205 = sbr.rel (%p203) target = $region32
    $region31: #{cbam_pallas.1} parent=5 // pred_region
      // Predicated region
      $region33: #{cbam_pallas.1} parent=31 // pred_check
        %p206 = pneg %p33
      $region34: #{cbam_pallas.1} parent=31 // pred_check_branch
        %208 = sbr.rel (%p206) target = $region36
      $region35: #{cbam_pallas.1} parent=31 // pred_region
        %p209 = scmp.lt.s32.totalorder %s13, 1
        %s210 = scalar_select %p209, %s13, 1
        %s211 = smul.addr %s210, 8
        %s212 = smul.addr %s211, 8
        %s213 = scalar_lea.vmem %s0, %s212
      $region36: #{cbam_pallas.1} parent=31 // pred_fallthru
        _
      // Predicated region
      $region37: #{cbam_pallas.1} parent=31 // pred_check
        %p214 = pneg %p59
      $region38: #{cbam_pallas.1} parent=31 // pred_check_branch
        %216 = sbr.rel (%p214) target = $region40
      $region39: #{cbam_pallas.1} parent=31 // pred_region
        %p217 = scmp.lt.s32.totalorder %s13, 1
        %s218 = scalar_select %p217, %s13, 1
        %s219 = smul.addr %s218, 4
        %s220 = smul.addr %s219, 8
        %s221 = scalar_lea.vmem %s1, %s220
      $region40: #{cbam_pallas.1} parent=31 // pred_fallthru
        _
    $region32: #{cbam_pallas.1} parent=5 // pred_fallthru
      _
    %p222 = scmp.le.s32.totalorder 1, %s13
    %p223 = scmp.lt.s32.totalorder %s13, 3
    %p224 = pnand %p222, %p223
    %p225 = pneg %p224
    // Predicated region
    $region41: #{cbam_pallas.1} parent=5 // pred_check
      _
    $region42: #{cbam_pallas.1} parent=5 // pred_check_branch
      %227 = sbr.rel (%p224) target = $region44
    $region43: #{cbam_pallas.1} parent=5 // pred_region
      %s228 = ssub.s32 %s13, 1
      %p229 = scmp.lt.s32.totalorder %s18, 1
      %s230 = scalar_select %p229, %s18, 1
      %s231 = smul.addr %s230, 8
      %s232 = smul.addr %s231, 8
      %s233 = scalar_lea.vmem %s0, %s232
      %p234 = pneg %p39
      %p235 = pneg %p36
      %p236 = scmp.lt.s32.totalorder %s18, 1
      %s237 = scalar_select %p236, %s18, 1
      %s238 = smul.addr %s237, 4
      %s239 = smul.addr %s238, 8
      %s240 = scalar_lea.vmem %s1, %s239
      %p241 = pneg %p65
      %p242 = pneg %p62
      %p243 = pneg %p86
      %p244 = pneg %p83
      %p245 = pneg %p107
      %p246 = pneg %p104
      %p247 = pneg %p128
      %p248 = pneg %p125
      %p249 = pneg %p149
      %p250 = pneg %p146
      %p251 = pneg %p175
      %p252 = pneg %p172
      %p253 = scmp.lt.s32.totalorder %s18, 1
      %s254 = scalar_select %p253, %s18, 1
      %s255 = smul.addr %s254, 8
      %s256 = smul.addr %s255, 8
      %s257 = scalar_lea.vmem %s6, %s256
      %p258 = scmp.lt.s32.totalorder %s18, 1
      %s259 = scalar_select %p258, %s18, 1
      %s260 = smul.addr %s259, 8
      %s261 = smul.addr %s260, 8
      %s262 = scalar_lea.vmem %s0, %s261
      %p263 = scmp.lt.s32.totalorder %s18, 1
      %s264 = scalar_select %p263, %s18, 1
      %s265 = smul.addr %s264, 4
      %s266 = smul.addr %s265, 8
      %s267 = scalar_lea.vmem %s1, %s266
      %p268 = scmp.lt.s32.totalorder %s18, 1
      %s269 = scalar_select %p268, %s18, 1
      %s270 = smul.addr %s269, 8
      %s271 = smul.addr %s270, 8
      %s272 = scalar_lea.vmem %s6, %s271
      %v274 = vld [vmem:[%s3] sm:$0x3]
      %v275 = vld [vmem:[%s4] sm:$0x3]
      %v276 = vld [vmem:[%s2] sm:$0xf]
      %v277 = vld [vmem:[%s2 + $0x4] sm:$0xf]
      %v278 = vld [vmem:[%s2 + $0x8] sm:$0xf]
      %v279 = vld [vmem:[%s2 + $0xc] sm:$0xf]
      %v280 = vld [vmem:[%s2 + $0x10] sm:$0xf]
      %v281 = vld [vmem:[%s2 + $0x14] sm:$0xf]
      %v282 = vld [vmem:[%s2 + $0x18] sm:$0xf]
      %v283 = vld [vmem:[%s2 + $0x1c] sm:$0xf]
      %v284 = vld [vmem:[%s2 + $0x20] sm:$0xf]
      %v285 = vld [vmem:[%s2 + $0x24] sm:$0xf]
      %v286 = vld [vmem:[%s2 + $0x28] sm:$0xf]
      %v287 = vld [vmem:[%s2 + $0x2c] sm:$0xf]
      %v288 = vld [vmem:[%s2 + $0x30] sm:$0xf]
      %v289 = vld [vmem:[%s2 + $0x34] sm:$0xf]
      %s290 = sld [smem:[#allocation2]]
      %vm291 = vcmp.ge.s32.totalorder %v274, 3
      %vm292 = vcmp.le.s32.totalorder %v274, 18
      %vm293 = vmand %vm291, %vm292
      %vm294 = vcmp.ge.s32.totalorder %v274, 2
      %vm295 = vcmp.le.s32.totalorder %v274, 17
      %vm296 = vmand %vm294, %vm295
      %vm297 = vcmp.ge.s32.totalorder %v274, 1
      %vm298 = vcmp.le.s32.totalorder %v274, 16
      %vm299 = vmand %vm297, %vm298
      %vm300 = vcmp.ge.s32.totalorder %v274, 4294967295
      %vm301 = vcmp.le.s32.totalorder %v274, 14
      %vm302 = vmand %vm300, %vm301
      %vm303 = vcmp.ge.s32.totalorder %v274, 4294967294
      %vm304 = vcmp.le.s32.totalorder %v274, 13
      %vm305 = vmand %vm303, %vm304
      %vm306 = vcmp.ge.s32.totalorder %v274, 4294967293
      %vm307 = vcmp.le.s32.totalorder %v274, 12
      %vm308 = vmand %vm306, %vm307
      %vm309 = vcmp.ge.s32.totalorder %v275, 3
      %vm310 = vcmp.le.s32.totalorder %v275, 18
      %vm311 = vmand %vm309, %vm310
      %vm312 = vcmp.ge.s32.totalorder %v275, 2
      %vm313 = vcmp.le.s32.totalorder %v275, 17
      %vm314 = vmand %vm312, %vm313
      %vm315 = vcmp.ge.s32.totalorder %v275, 1
      %vm316 = vcmp.le.s32.totalorder %v275, 16
      %vm317 = vmand %vm315, %vm316
      %vm318 = vcmp.ge.s32.totalorder %v275, 4294967295
      %vm319 = vcmp.le.s32.totalorder %v275, 14
      %vm320 = vmand %vm318, %vm319
      %vm321 = vcmp.ge.s32.totalorder %v275, 4294967294
      %vm322 = vcmp.le.s32.totalorder %v275, 13
      %vm323 = vmand %vm321, %vm322
      %vm324 = vcmp.ge.s32.totalorder %v275, 4294967293
      %vm325 = vcmp.le.s32.totalorder %v275, 12
      %vm326 = vmand %vm324, %vm325
      %v327 = vld [vmem:[%s262] sm:$0xff]
      %v328 = vld [vmem:[%s262 + $0x8] sm:$0xff]
      %v329 = vld [vmem:[%s262 + $0x10] sm:$0xff]
      %v330 = vld [vmem:[%s262 + $0x18] sm:$0xff]
      %v331 = vld [vmem:[%s262 + $0x20] sm:$0xff]
      %v332 = vld [vmem:[%s262 + $0x28] sm:$0xff]
      %v333 = vld [vmem:[%s262 + $0x30] sm:$0xff]
      %v334 = vld [vmem:[%s262 + $0x38] sm:$0xff]
      %v335 = vpack.c.bf16 %v328, %v327
      %v336 = vpack.c.bf16 %v330, %v329
      %v337 = vpack.c.bf16 %v332, %v331
      %v338 = vpack.c.bf16 %v334, %v333
      %v339 = vunpack.c.l.bf16 %v335
      %v340 = vunpack.c.h.bf16 %v335
      %v341 = vunpack.c.l.bf16 %v336
      %v342 = vunpack.c.h.bf16 %v336
      %v343 = vunpack.c.l.bf16 %v337
      %v344 = vunpack.c.h.bf16 %v337
      %v345 = vunpack.c.l.bf16 %v338
      %v346 = vunpack.c.h.bf16 %v338
      %v347 = vsub.f32 %v327, %v339
      %v348 = vsub.f32 %v328, %v340
      %v349 = vsub.f32 %v329, %v341
      %v350 = vsub.f32 %v330, %v342
      %v351 = vsub.f32 %v331, %v343
      %v352 = vsub.f32 %v332, %v344
      %v353 = vsub.f32 %v333, %v345
      %v354 = vsub.f32 %v334, %v346
      %v355 = vpack.c.bf16 %v349, %v347
      %v356 = vpack.c.bf16 %v350, %v348
      %v357 = vpack.c.bf16 %v353, %v351
      %v358 = vpack.c.bf16 %v354, %v352
      %v373 = vunpack.c.l.b16 %v276
      %v374 = vunpack.c.l.b16 %v277
      %v375 = vunpack.c.l.b16 %v278
      %v376 = vunpack.c.l.b16 %v279
      %v377 = vunpack.c.l.b16 %v280
      %v378 = vunpack.c.l.b16 %v281
      %v379 = vunpack.c.l.b16 %v282
      %v380 = vunpack.c.l.b16 %v283
      %v381 = vunpack.c.l.b16 %v284
      %v382 = vunpack.c.l.b16 %v285
      %v383 = vunpack.c.l.b16 %v286
      %v384 = vunpack.c.l.b16 %v287
      %v385 = vunpack.c.l.b16 %v288
      %v386 = vunpack.c.l.b16 %v289
      %v387 = vpack.c.b16 %v374, %v373
      %v388 = vpack.c.b16 %v376, %v375
      %v389 = vpack.c.b16 %v378, %v377
      %v390 = vpack.c.b16 %v380, %v379
      %v391 = vpack.c.b16 %v382, %v381
      %v392 = vpack.c.b16 %v384, %v383
      %v393 = vpack.c.b16 %v386, %v385
      %v398 = vunpack.c.l.b16 %v335
      %v399 = vunpack.c.h.b16 %v335
      %v400 = vunpack.c.l.b16 %v336
      %v401 = vunpack.c.h.b16 %v336
      %v402 = vunpack.c.l.b16 %v337
      %v403 = vunpack.c.h.b16 %v337
      %v404 = vunpack.c.l.b16 %v338
      %v405 = vunpack.c.h.b16 %v338
      %v406 = vpack.c.b16 %v400, %v398
      %v407 = vpack.c.b16 %v401, %v399
      %v408 = vpack.c.b16 %v404, %v402
      %v409 = vpack.c.b16 %v405, %v403
      %vm414 = vcmask 261120
      %v416 = vsel %vm414, %v387, 0
      %v419 = vsel %vm414, %v388, 0
      %v422 = vsel %vm414, %v389, 0
      %v425 = vsel %vm414, %v390, 0
      %v428 = vsel %vm414, %v391, 0
      %v431 = vsel %vm414, %v392, 0
      %v434 = vsel %vm414, %v393, 0
      %436 = vmatpush.bf16.msra.mxu0 0
      %437 = vmatpush.bf16.msra.mxu0 0
      %438 = vmatpush.bf16.msra.mxu0 0
      %439 = vmatpush.bf16.msra.mxu0 0
      %440 = vmatpush.bf16.msra.mxu0 0
      %441 = vmatpush.bf16.msra.mxu0 0
      %442 = vmatpush.bf16.msra.mxu0 %v408
      %443 = vmatpush.bf16.msra.mxu0 %v406
      %444 = vmatmul.bf16.gmra.mxu0 %v416
      %v445 = vpop.f32.mrf.mxu0
      %v446 = vadd.f32 0.0, %v445
      %v447 = vpop.f32.mrf.mxu0
      %v448 = vadd.f32 0.0, %v447
      %449 = vmatmul.bf16.gmra.mxu0 %v419
      %v450 = vpop.f32.mrf.mxu0
      %v451 = vadd.f32 0.0, %v450
      %v452 = vpop.f32.mrf.mxu0
      %v453 = vadd.f32 0.0, %v452
      %454 = vmatmul.bf16.gmra.mxu0 %v422
      %v455 = vpop.f32.mrf.mxu0
      %v456 = vadd.f32 0.0, %v455
      %v457 = vpop.f32.mrf.mxu0
      %v458 = vadd.f32 0.0, %v457
      %459 = vmatmul.bf16.gmra.mxu0 %v425
      %v460 = vpop.f32.mrf.mxu0
      %v461 = vadd.f32 0.0, %v460
      %v462 = vpop.f32.mrf.mxu0
      %v463 = vadd.f32 0.0, %v462
      %464 = vmatmul.bf16.gmra.mxu0 %v428
      %v465 = vpop.f32.mrf.mxu0
      %v466 = vadd.f32 0.0, %v465
      %v467 = vpop.f32.mrf.mxu0
      %v468 = vadd.f32 0.0, %v467
      %469 = vmatmul.bf16.gmra.mxu0 %v431
      %v470 = vpop.f32.mrf.mxu0
      %v471 = vadd.f32 0.0, %v470
      %v472 = vpop.f32.mrf.mxu0
      %v473 = vadd.f32 0.0, %v472
      %474 = vmatmul.bf16.gmra.mxu0 %v434
      %v475 = vpop.f32.mrf.mxu0
      %v476 = vadd.f32 0.0, %v475
      %v477 = vpop.f32.mrf.mxu0
      %v478 = vadd.f32 0.0, %v477
      %479 = vdwg.mxu0
      %480 = vmatpush.bf16.msra.mxu0 0
      %481 = vmatpush.bf16.msra.mxu0 0
      %482 = vmatpush.bf16.msra.mxu0 0
      %483 = vmatpush.bf16.msra.mxu0 0
      %484 = vmatpush.bf16.msra.mxu0 0
      %485 = vmatpush.bf16.msra.mxu0 0
      %486 = vmatpush.bf16.msra.mxu0 %v409
      %487 = vmatpush.bf16.msra.mxu0 %v407
      %488 = vmatmul.bf16.gmra.mxu0 %v416
      %v489 = vpop.f32.mrf.mxu0
      %v490 = vadd.f32 0.0, %v489
      %v491 = vpop.f32.mrf.mxu0
      %v492 = vadd.f32 0.0, %v491
      %493 = vmatmul.bf16.gmra.mxu0 %v419
      %v494 = vpop.f32.mrf.mxu0
      %v495 = vadd.f32 0.0, %v494
      %v496 = vpop.f32.mrf.mxu0
      %v497 = vadd.f32 0.0, %v496
      %498 = vmatmul.bf16.gmra.mxu0 %v422
      %v499 = vpop.f32.mrf.mxu0
      %v500 = vadd.f32 0.0, %v499
      %v501 = vpop.f32.mrf.mxu0
      %v502 = vadd.f32 0.0, %v501
      %503 = vmatmul.bf16.gmra.mxu0 %v425
      %v504 = vpop.f32.mrf.mxu0
      %v505 = vadd.f32 0.0, %v504
      %v506 = vpop.f32.mrf.mxu0
      %v507 = vadd.f32 0.0, %v506
      %508 = vmatmul.bf16.gmra.mxu0 %v428
      %v509 = vpop.f32.mrf.mxu0
      %v510 = vadd.f32 0.0, %v509
      %v511 = vpop.f32.mrf.mxu0
      %v512 = vadd.f32 0.0, %v511
      %513 = vmatmul.bf16.gmra.mxu0 %v431
      %v514 = vpop.f32.mrf.mxu0
      %v515 = vadd.f32 0.0, %v514
      %v516 = vpop.f32.mrf.mxu0
      %v517 = vadd.f32 0.0, %v516
      %518 = vmatmul.bf16.gmra.mxu0 %v434
      %v519 = vpop.f32.mrf.mxu0
      %v520 = vadd.f32 0.0, %v519
      %v521 = vpop.f32.mrf.mxu0
      %v522 = vadd.f32 0.0, %v521
      %523 = vdwg.mxu0
      %v524 = vpack.c.b16 %v379, %v379
      %v526 = vsel %vm414, %v524, 0
      %528 = vmatpush.bf16.msra.mxu0 0
      %529 = vmatpush.bf16.msra.mxu0 0
      %530 = vmatpush.bf16.msra.mxu0 0
      %531 = vmatpush.bf16.msra.mxu0 0
      %532 = vmatpush.bf16.msra.mxu0 0
      %533 = vmatpush.bf16.msra.mxu0 0
      %534 = vmatpush.bf16.msra.mxu0 %v357
      %535 = vmatpush.bf16.msra.mxu0 %v355
      %536 = vmatmul.bf16.gmra.mxu0 %v416
      %v537 = vpop.f32.mrf.mxu0
      %v538 = vadd.f32 0.0, %v537
      %v539 = vpop.f32.mrf.mxu0
      %v540 = vadd.f32 0.0, %v539
      %541 = vmatmul.bf16.gmra.mxu0 %v419
      %v542 = vpop.f32.mrf.mxu0
      %v543 = vadd.f32 0.0, %v542
      %v544 = vpop.f32.mrf.mxu0
      %v545 = vadd.f32 0.0, %v544
      %546 = vmatmul.bf16.gmra.mxu0 %v422
      %v547 = vpop.f32.mrf.mxu0
      %v548 = vadd.f32 0.0, %v547
      %v549 = vpop.f32.mrf.mxu0
      %v550 = vadd.f32 0.0, %v549
      %551 = vmatmul.bf16.gmra.mxu0 %v526
      %v552 = vpop.f32.mrf.mxu0
      %v553 = vadd.f32 0.0, %v552
      %v554 = vpop.f32.mrf.mxu0
      %555 = vdwg.mxu0
      %556 = vmatpush.bf16.msra.mxu0 0
      %557 = vmatpush.bf16.msra.mxu0 0
      %558 = vmatpush.bf16.msra.mxu0 0
      %559 = vmatpush.bf16.msra.mxu0 0
      %560 = vmatpush.bf16.msra.mxu0 0
      %561 = vmatpush.bf16.msra.mxu0 0
      %562 = vmatpush.bf16.msra.mxu0 %v358
      %563 = vmatpush.bf16.msra.mxu0 %v356
      %564 = vmatmul.bf16.gmra.mxu0 %v416
      %v565 = vpop.f32.mrf.mxu0
      %v566 = vadd.f32 0.0, %v565
      %v567 = vpop.f32.mrf.mxu0
      %v568 = vadd.f32 0.0, %v567
      %569 = vmatmul.bf16.gmra.mxu0 %v419
      %v570 = vpop.f32.mrf.mxu0
      %v571 = vadd.f32 0.0, %v570
      %v572 = vpop.f32.mrf.mxu0
      %v573 = vadd.f32 0.0, %v572
      %574 = vmatmul.bf16.gmra.mxu0 %v422
      %v575 = vpop.f32.mrf.mxu0
      %v576 = vadd.f32 0.0, %v575
      %v577 = vpop.f32.mrf.mxu0
      %v578 = vadd.f32 0.0, %v577
      %579 = vmatmul.bf16.gmra.mxu0 %v526
      %v580 = vpop.f32.mrf.mxu0
      %v581 = vadd.f32 0.0, %v580
      %v582 = vpop.f32.mrf.mxu0
      %583 = vdwg.mxu0
      %v584 = vadd.f32 %v446, %v463
      %v585 = vadd.f32 %v490, %v507
      %v586 = vadd.f32 %v448, %v466
      %v587 = vadd.f32 %v492, %v510
      %v588 = vadd.f32 %v451, %v468
      %v589 = vadd.f32 %v495, %v512
      %v590 = vadd.f32 %v453, %v471
      %v591 = vadd.f32 %v497, %v515
      %v592 = vadd.f32 %v456, %v473
      %v593 = vadd.f32 %v500, %v517
      %v594 = vadd.f32 %v458, %v476
      %v595 = vadd.f32 %v502, %v520
      %v596 = vadd.f32 %v461, %v478
      %v597 = vadd.f32 %v505, %v522
      %v598 = vadd.f32 %v584, %v538
      %v599 = vadd.f32 %v585, %v566
      %v600 = vadd.f32 %v586, %v540
      %v601 = vadd.f32 %v587, %v568
      %v602 = vadd.f32 %v588, %v543
      %v603 = vadd.f32 %v589, %v571
      %v604 = vadd.f32 %v590, %v545
      %v605 = vadd.f32 %v591, %v573
      %v606 = vadd.f32 %v592, %v548
      %v607 = vadd.f32 %v593, %v576
      %v608 = vadd.f32 %v594, %v550
      %v609 = vadd.f32 %v595, %v578
      %v610 = vadd.f32 %v596, %v553
      %v611 = vadd.f32 %v597, %v581
      %612 = vrot.lane.b32.xlu0 %v598, 48
      %v613 = vpop.permute.xlu0 %612
      %614 = vrot.lane.b32.xlu0 %v599, 48
      %v615 = vpop.permute.xlu0 %614
      %v616 = vlaneseq
      %v617 = vand.u32 %v616, 127
      %vm618 = vcmp.lt.s32.totalorder %v617, 48
      %v619 = vsel %vm618, %v613, %v615
      %v620 = vsel %vm618, %v615, %v613
      %v621 = vsel %vm293, 1, 0
      %v622 = vperm.slane %v621, 0
      %v623 = vperm.slane %v621, 1
      %vm624 = vcmp.eq.s32.totalorder %v622, 1
      %vm625 = vcmp.eq.s32.totalorder %v623, 1
      %v626 = vsel %vm624, %v620, 0.0
      %v627 = vsel %vm625, %v619, 0.0
      %628 = vrot.lane.b32.xlu0 %v600, 32
      %v629 = vpop.permute.xlu0 %628
      %630 = vrot.lane.b32.xlu0 %v601, 32
      %v631 = vpop.permute.xlu0 %630
      %vm632 = vcmp.lt.s32.totalorder %v617, 32
      %v633 = vsel %vm632, %v629, %v631
      %v634 = vsel %vm632, %v631, %v629
      %v635 = vsel %vm296, 1, 0
      %v636 = vperm.slane %v635, 0
      %v637 = vperm.slane %v635, 1
      %vm638 = vcmp.eq.s32.totalorder %v636, 1
      %vm639 = vcmp.eq.s32.totalorder %v637, 1
      %v640 = vsel %vm638, %v634, 0.0
      %v641 = vsel %vm639, %v633, 0.0
      %v642 = vadd.f32 %v626, %v640
      %v643 = vadd.f32 %v627, %v641
      %644 = vrot.lane.b32.xlu0 %v602, 16
      %v645 = vpop.permute.xlu0 %644
      %646 = vrot.lane.b32.xlu0 %v603, 16
      %v647 = vpop.permute.xlu0 %646
      %vm648 = vcmp.lt.s32.totalorder %v617, 16
      %v649 = vsel %vm648, %v645, %v647
      %v650 = vsel %vm648, %v647, %v645
      %v651 = vsel %vm299, 1, 0
      %v652 = vperm.slane %v651, 0
      %v653 = vperm.slane %v651, 1
      %vm654 = vcmp.eq.s32.totalorder %v652, 1
      %vm655 = vcmp.eq.s32.totalorder %v653, 1
      %v656 = vsel %vm654, %v650, 0.0
      %v657 = vsel %vm655, %v649, 0.0
      %v658 = vadd.f32 %v642, %v656
      %v659 = vadd.f32 %v643, %v657
      %v660 = vadd.f32 %v658, %v604
      %v661 = vadd.f32 %v659, %v605
      %662 = vrot.lane.b32.xlu0 %v606, 112
      %v663 = vpop.permute.xlu0 %662
      %664 = vrot.lane.b32.xlu0 %v607, 112
      %v665 = vpop.permute.xlu0 %664
      %vm666 = vcmp.lt.s32.totalorder %v617, 112
      %v667 = vsel %vm666, %v663, %v665
      %v668 = vsel %vm666, %v665, %v663
      %v669 = vsel %vm302, 1, 0
      %v670 = vperm.slane %v669, 0
      %v671 = vperm.slane %v669, 1
      %vm672 = vcmp.eq.s32.totalorder %v670, 1
      %vm673 = vcmp.eq.s32.totalorder %v671, 1
      %v674 = vsel %vm672, %v667, 0.0
      %v675 = vsel %vm673, %v668, 0.0
      %v676 = vadd.f32 %v660, %v674
      %v677 = vadd.f32 %v661, %v675
      %678 = vrot.lane.b32.xlu0 %v608, 96
      %v679 = vpop.permute.xlu0 %678
      %680 = vrot.lane.b32.xlu0 %v609, 96
      %v681 = vpop.permute.xlu0 %680
      %vm682 = vcmp.lt.s32.totalorder %v617, 96
      %v683 = vsel %vm682, %v679, %v681
      %v684 = vsel %vm682, %v681, %v679
      %v685 = vsel %vm305, 1, 0
      %v686 = vperm.slane %v685, 0
      %v687 = vperm.slane %v685, 1
      %vm688 = vcmp.eq.s32.totalorder %v686, 1
      %vm689 = vcmp.eq.s32.totalorder %v687, 1
      %v690 = vsel %vm688, %v683, 0.0
      %v691 = vsel %vm689, %v684, 0.0
      %v692 = vadd.f32 %v676, %v690
      %v693 = vadd.f32 %v677, %v691
      %694 = vrot.lane.b32.xlu0 %v610, 80
      %v695 = vpop.permute.xlu0 %694
      %696 = vrot.lane.b32.xlu0 %v611, 80
      %v697 = vpop.permute.xlu0 %696
      %vm698 = vcmp.lt.s32.totalorder %v617, 80
      %v699 = vsel %vm698, %v695, %v697
      %v700 = vsel %vm698, %v697, %v695
      %v701 = vsel %vm308, 1, 0
      %v702 = vperm.slane %v701, 0
      %v703 = vperm.slane %v701, 1
      %vm704 = vcmp.eq.s32.totalorder %v702, 1
      %vm705 = vcmp.eq.s32.totalorder %v703, 1
      %v706 = vsel %vm704, %v699, 0.0
      %v707 = vsel %vm705, %v700, 0.0
      %v708 = vadd.f32 %v692, %v706
      %v709 = vadd.f32 %v693, %v707
      %710 = vrot.lane.b32.xlu0 %v708, 3
      %v711 = vpop.permute.xlu0 %710
      %712 = vrot.lane.b32.xlu0 %v709, 3
      %v713 = vpop.permute.xlu0 %712
      %vm714 = vcmp.lt.s32.totalorder %v617, 3
      %v715 = vsel %vm714, %v711, %v713
      %v716 = vsel %vm714, %v713, %v711
      %v719 = vrot.slane %v715, 7
      %vm720 = vcmask 1040384
      %v721 = vsel %vm720, %v716, %v719
      %v723 = vsel %vm311, %v721, 0.0
      %v726 = vrot.slane %v708, 1
      %v727 = vrot.slane %v709, 1
      %730 = vrot.lane.b32.xlu0 %v726, 2
      %v731 = vpop.permute.xlu0 %730
      %732 = vrot.lane.b32.xlu0 %v727, 2
      %v733 = vpop.permute.xlu0 %732
      %vm734 = vcmp.lt.s32.totalorder %v617, 2
      %v735 = vsel %vm734, %v731, %v733
      %v736 = vsel %vm734, %v733, %v731
      %v739 = vrot.slane %v735, 7
      %v740 = vsel %vm720, %v736, %v739
      %v742 = vsel %vm314, %v740, 0.0
      %v743 = vadd.f32 %v723, %v742
      %v744 = vrot.slane %v708, 2
      %v745 = vrot.slane %v709, 2
      %748 = vrot.lane.b32.xlu0 %v744, 1
      %v749 = vpop.permute.xlu0 %748
      %750 = vrot.lane.b32.xlu0 %v745, 1
      %v751 = vpop.permute.xlu0 %750
      %vm752 = vcmp.lt.s32.totalorder %v617, 1
      %v753 = vsel %vm752, %v749, %v751
      %v754 = vsel %vm752, %v751, %v749
      %v757 = vrot.slane %v753, 7
      %v758 = vsel %vm720, %v754, %v757
      %v760 = vsel %vm317, %v758, 0.0
      %v761 = vadd.f32 %v743, %v760
      %762 = vst [vmem:[#allocation1] sm:$0xff] %v708
      %763 = vst [vmem:[#allocation1 + $0x9] sm:$0xff] %v709
      %s764 = scalar_lea.vmem [#allocation1], 3
      %v765 = vld [vmem:[%s764] ss:$9 sm:$0xff]
      %v767 = vadd.f32 %v761, %v765
      %v768 = vrot.slane %v708, 4
      %v769 = vrot.slane %v709, 4
      %772 = vrot.lane.b32.xlu0 %v768, 127
      %v773 = vpop.permute.xlu0 %772
      %774 = vrot.lane.b32.xlu0 %v769, 127
      %v775 = vpop.permute.xlu0 %774
      %vm776 = vcmp.lt.s32.totalorder %v617, 127
      %v777 = vsel %vm776, %v773, %v775
      %v778 = vsel %vm776, %v775, %v773
      %v781 = vrot.slane %v778, 7
      %v782 = vsel %vm720, %v777, %v781
      %v784 = vsel %vm320, %v782, 0.0
      %v785 = vadd.f32 %v767, %v784
      %v786 = vrot.slane %v708, 5
      %v787 = vrot.slane %v709, 5
      %790 = vrot.lane.b32.xlu0 %v786, 126
      %v791 = vpop.permute.xlu0 %790
      %792 = vrot.lane.b32.xlu0 %v787, 126
      %v793 = vpop.permute.xlu0 %792
      %vm794 = vcmp.lt.s32.totalorder %v617, 126
      %v795 = vsel %vm794, %v791, %v793
      %v796 = vsel %vm794, %v793, %v791
      %v799 = vrot.slane %v796, 7
      %v800 = vsel %vm720, %v795, %v799
      %v802 = vsel %vm323, %v800, 0.0
      %v803 = vadd.f32 %v785, %v802
      %v804 = vrot.slane %v708, 6
      %v805 = vrot.slane %v709, 6
      %808 = vrot.lane.b32.xlu0 %v804, 125
      %v809 = vpop.permute.xlu0 %808
      %810 = vrot.lane.b32.xlu0 %v805, 125
      %v811 = vpop.permute.xlu0 %810
      %vm812 = vcmp.lt.s32.totalorder %v617, 125
      %v813 = vsel %vm812, %v809, %v811
      %v814 = vsel %vm812, %v811, %v809
      %v817 = vrot.slane %v814, 7
      %v818 = vsel %vm720, %v813, %v817
      %v820 = vsel %vm326, %v818, 0.0
      %v821 = vadd.f32 %v803, %v820
      %v822 = vstv %s290
      %v823 = vadd.f32 %v821, %v822
      %v824 = vxor.u32 %v823, 2147483648
      %v825 = vmul.f32 %v824, 1.442695
      %v826 = vpow.pop %v825
      %v827 = vadd.f32 %v826, 1.0
      %v828 = vrcp.pop %v827
      %v829 = vmul.f32 %v827, %v828
      %v830 = vsub.f32 1.0, %v829
      %v831 = vmul.f32 %v828, %v830
      %v832 = vadd.f32 %v828, %v831
      %vm833 = vweird.f32 %v827
      %vm834 = vweird.f32 %v828
      %vm835 = vmor %vm833, %vm834
      %v836 = vsel %vm835, %v828, %v832
      %v837 = vand.u32 2147483647, %v827
      %vm838 = vcmp.eq.f32.partialorder %v837, 8.507059e+37
      %v839 = vand.u32 %v827, 2147483648
      %v840 = vor.u32 1.1754944e-38, %v839
      %v841 = vsel %vm838, %v840, %v836
      %v842 = vmul.f32 1.0, %v841
      %v843 = vld [vmem:[%s267] sm:$0xff]
      %v844 = vld [vmem:[%s267 + $0x8] sm:$0xff]
      %v845 = vld [vmem:[%s267 + $0x10] sm:$0xff]
      %v846 = vld [vmem:[%s267 + $0x18] sm:$0xff]
      %848 = vset.pattern.permute.xlu0 0
      %849 = vperm.xlu0 %848, %v843
      %v850 = vpop.permute.xlu0 %849
      %853 = vset.pattern.permute.xlu0 0
      %854 = vperm.xlu0 %853, %v844
      %v855 = vpop.permute.xlu0 %854
      %858 = vset.pattern.permute.xlu0 0
      %859 = vperm.xlu0 %858, %v845
      %v860 = vpop.permute.xlu0 %859
      %863 = vset.pattern.permute.xlu0 0
      %864 = vperm.xlu0 %863, %v846
      %v865 = vpop.permute.xlu0 %864
      %v867 = vmul.f32 %v327, %v850
      %v868 = vmul.f32 %v328, %v850
      %v869 = vmul.f32 %v329, %v855
      %v870 = vmul.f32 %v330, %v855
      %v871 = vmul.f32 %v331, %v860
      %v872 = vmul.f32 %v332, %v860
      %v873 = vmul.f32 %v333, %v865
      %v874 = vmul.f32 %v334, %v865
      %v876 = vperm.slane %v842, 0
      %v877 = vperm.slane %v842, 1
      %v880 = vmul.f32 %v867, %v876
      %v881 = vmul.f32 %v868, %v877
      %v882 = vmul.f32 %v869, %v876
      %v883 = vmul.f32 %v870, %v877
      %v884 = vmul.f32 %v871, %v876
      %v885 = vmul.f32 %v872, %v877
      %v886 = vmul.f32 %v873, %v876
      %v887 = vmul.f32 %v874, %v877
      %888 = vst [vmem:[%s272] sm:$0xff] %v880
      %889 = vst [vmem:[%s272 + $0x8] sm:$0xff] %v881
      %890 = vst [vmem:[%s272 + $0x10] sm:$0xff] %v882
      %891 = vst [vmem:[%s272 + $0x18] sm:$0xff] %v883
      %892 = vst [vmem:[%s272 + $0x20] sm:$0xff] %v884
      %893 = vst [vmem:[%s272 + $0x28] sm:$0xff] %v885
      %894 = vst [vmem:[%s272 + $0x30] sm:$0xff] %v886
      %895 = vst [vmem:[%s272 + $0x38] sm:$0xff] %v887
      %p896 = scmp.lt.s32.totalorder %s18, 1
      %s897 = scalar_select %p896, %s18, 1
      %s898 = smul.addr %s897, 8
      %s899 = smul.addr %s898, 8
      %s900 = scalar_lea.vmem %s6, %s899
      // Predicated region
      $region45: #{cbam_pallas.1} parent=43 // pred_check
        %p901 = pneg %p172
      $region46: #{cbam_pallas.1} parent=43 // pred_check_branch
        %903 = sbr.rel (%p901) target = $region48
      $region47: #{cbam_pallas.1} parent=43 // pred_region
        _
      $region48: #{cbam_pallas.1} parent=43 // pred_fallthru
        _
    $region44: #{cbam_pallas.1} parent=5 // pred_fallthru
      _
    %p904 = scmp.le.s32.totalorder 2, %s13
    // Predicated region
    $region49: #{cbam_pallas.1} parent=5 // pred_check
      %p905 = pneg %p904
    $region50: #{cbam_pallas.1} parent=5 // pred_check_branch
      %907 = sbr.rel (%p905) target = $region52
    $region51: #{cbam_pallas.1} parent=5 // pred_region
      %s908 = ssub.s32 %s13, 2
      // Predicated region
      $region53: #{cbam_pallas.1} parent=51 // pred_check
        %p909 = pneg %p178
      $region54: #{cbam_pallas.1} parent=51 // pred_check_branch
        %911 = sbr.rel (%p909) target = $region56
      $region55: #{cbam_pallas.1} parent=51 // pred_region
        %p912 = scmp.lt.s32.totalorder %s19, 1
        %s913 = scalar_select %p912, %s19, 1
        %s914 = smul.addr %s913, 8
        %s915 = smul.addr %s914, 8
        %s916 = scalar_lea.vmem %s6, %s915
      $region56: #{cbam_pallas.1} parent=51 // pred_fallthru
        _
    $region52: #{cbam_pallas.1} parent=5 // pred_fallthru
      _
  $region6: #{cbam_pallas.1} parent=0 // loop_footer
    %s17 = sadd.s32 1, %s13
  $region7: #{cbam_pallas.1} parent=0 // loop_footer_branch
    %12 = sbr.rel target = $region3
  $region8: #{cbam_pallas.1} parent=0 // loop_exit
    _

</llo_original>
